<compile_context>
chip_gen: v5e
topology: v5e:2x2
jax: 0.10.0
libtpu: 0.0.40
codegen_flags: <defaults>
</compile_context>

<pallas_src>
import jax
import jax.numpy as jnp
from jax.experimental import pallas as pl
from jax.experimental.pallas import tpu as pltpu


def _round_up(x: int, m: int) -> int:
    return ((x + m - 1) // m) * m


def lr_kernel(x_ref, w_ref, b_ref, o_ref):
    # x_ref: (TM, in_dim)   w_ref: (in_dim, n_classes)   b_ref: (1, n_classes)
    # o_ref: (TM, n_classes)
    acc = jnp.dot(x_ref[...], w_ref[...], preferred_element_type=jnp.float32)
    o_ref[...] = (acc + b_ref[...].astype(jnp.float32)).astype(o_ref.dtype)


def lr_model_forward(x, weight, bias, *, tm=4096):
    """Forward pass of LR_model: out = x @ weight.T + bias.

    Args:
      x:      (B, in_dim)          float32 or bfloat16
      weight: (n_classes, in_dim)  (native PyTorch nn.Linear layout)
      bias:   (n_classes,)
    Returns:
      (B, n_classes) in x.dtype
    """
    B, in_dim = x.shape
    n_classes = weight.shape[0]

    # One-time, tiny (n_classes x in_dim ~ 8 KB) transpose in the wrapper so the
    # kernel contracts with a plain jnp.dot (no per-step XLU re-transpose of W).
    wt = weight.T.astype(x.dtype)            # (in_dim, n_classes)
    b2d = bias.reshape(1, n_classes)         # 2-D for TPU vreg layout

    # Sublane alignment: 8 rows for 4-byte dtypes, 16 for bf16, 32 for int8.
    itemsize = jnp.dtype(x.dtype).itemsize
    sub = 8 * max(1, 4 // max(1, itemsize))

    # Batch tile: as large as fits comfortably (double-buffered x stays well under
    # v5e's 16 MiB scoped VMEM at tm=4096 f32); shrink for small batches.
    tm_eff = min(tm, _round_up(B, sub))
    n_tiles = pl.cdiv(B, tm_eff)
    # Keep the grid length even when >1 so v7x's two TensorCores stay balanced.
    if n_tiles > 1 and n_tiles % 2 == 1:
        tm_eff = _round_up(pl.cdiv(B, n_tiles + 1), sub)
        n_tiles = pl.cdiv(B, tm_eff)

    cost = pl.CostEstimate(
        flops=2 * B * in_dim * n_classes,
        transcendentals=0,
        bytes_accessed=(B * in_dim * itemsize
                        + in_dim * n_classes * itemsize
                        + n_classes * 4
                        + B * n_classes * itemsize),
    )

    return pl.pallas_call(
        lr_kernel,
        out_shape=jax.ShapeDtypeStruct((B, n_classes), x.dtype),
        grid_spec=pltpu.PrefetchScalarGridSpec(
            num_scalar_prefetch=0,
            grid=(n_tiles,),
            in_specs=[
                # x: streamed, one (TM, in_dim) tile per grid step (double-buffered).
                pl.BlockSpec((tm_eff, in_dim), lambda i: (i, 0)),
                # weight^T + bias: resident across all grid steps.
                pl.BlockSpec((in_dim, n_classes), lambda i: (0, 0)),
                pl.BlockSpec((1, n_classes), lambda i: (0, 0)),
            ],
            out_specs=pl.BlockSpec((tm_eff, n_classes), lambda i: (i, 0)),
        ),
        compiler_params=pltpu.CompilerParams(
            # Batch tiles are independent -> shard across TensorCores on v7x.
            dimension_semantics=("parallel",),
        ),
        cost_estimate=cost,
    )(x, wt, b2d)


if __name__ == "__main__":
    # config = {'mode': 'gnn', 'model_name': 'gcn', 'n_classes': 8}
    #   -> in_dim = 256, classifier = nn.Linear(256, 8)
    in_dim = 256
    n_classes = 8

    key = jax.random.PRNGKey(0)
    kx, kw, kb, kx2, kx3 = jax.random.split(key, 5)

    # Deterministic synthetic parameters (nn.Linear shapes: W (out, in), b (out,))
    bound = 1.0 / (in_dim ** 0.5)
    weight = jax.random.uniform(kw, (n_classes, in_dim), jnp.float32, -bound, bound)
    bias = jax.random.uniform(kb, (n_classes,), jnp.float32, -bound, bound)

    # Small batch (single tile path)
    batch = 8
    x = jax.random.normal(kx, (batch, in_dim), dtype=jnp.float32)
    out = jax.block_until_ready(lr_model_forward(x, weight, bias))
    ref = x @ weight.T + bias
    assert out.shape == (batch, n_classes)
    assert jnp.allclose(out, ref, atol=1e-5, rtol=1e-5), "mismatch vs reference (B=8)"

    # Batch not a multiple of 8 (exercises partial-final-block path, no padding copy)
    batch2 = 50
    x2 = jax.random.normal(kx2, (batch2, in_dim), dtype=jnp.float32)
    out2 = jax.block_until_ready(lr_model_forward(x2, weight, bias))
    ref2 = x2 @ weight.T + bias
    assert out2.shape == (batch2, n_classes)
    assert jnp.allclose(out2, ref2, atol=1e-5, rtol=1e-5), "mismatch vs reference (B=50)"

    # Multi-tile path with a small tile override (odd->even grid fixup + partial last block)
    batch3 = 600
    x3 = jax.random.normal(kx3, (batch3, in_dim), dtype=jnp.float32)
    out3 = jax.block_until_ready(lr_model_forward(x3, weight, bias, tm=128))
    ref3 = x3 @ weight.T + bias
    assert out3.shape == (batch3, n_classes)
    assert jnp.allclose(out3, ref3, atol=1e-5, rtol=1e-5), "mismatch vs reference (B=600)"

    # TODO(synk): if the upstream GNN encoder can emit bf16 activations, pass them
    # straight through (no wrapper-side cast) to roughly halve HBM traffic.
    print("KERNEL_OK")
</pallas_src>

<mosaic_0001>
module attributes {stable_mosaic.version = 11 : i64} {
  func.func @lr_kernel(%arg0: i32, %arg1: memref<8x256xf32, #tpu.memory_space<vmem>>, %arg2: memref<256x8xf32, #tpu.memory_space<vmem>>, %arg3: memref<1x8xf32, #tpu.memory_space<vmem>>, %arg4: memref<8x8xf32, #tpu.memory_space<vmem>>) attributes {dimension_semantics = [#tpu.dimension_semantics<parallel>], iteration_bounds = array<i64: 1>, scalar_prefetch = 0 : i64, scratch_operands = 0 : i64, tpu.core_type = #tpu.core_type<tc>, window_params = [{transform_indices = @transform_0, window_bounds = array<i64: 8, 256>}, {pipeline_mode = #tpu.pipeline_mode<synchronous>, transform_indices = @transform_1, window_bounds = array<i64: 256, 8>}, {pipeline_mode = #tpu.pipeline_mode<synchronous>, transform_indices = @transform_2, window_bounds = array<i64: 1, 8>}, {transform_indices = @transform_3, window_bounds = array<i64: 8, 8>}]} {
    %c0 = arith.constant 0 : index
    %c0_0 = arith.constant 0 : index
    %0 = vector.load %arg1[%c0, %c0_0] : memref<8x256xf32, #tpu.memory_space<vmem>>, vector<8x256xf32>
    %c0_1 = arith.constant 0 : index
    %c0_2 = arith.constant 0 : index
    %1 = vector.load %arg2[%c0_1, %c0_2] : memref<256x8xf32, #tpu.memory_space<vmem>>, vector<256x8xf32>
    %cst = arith.constant dense<0.000000e+00> : vector<8x8xf32>
    %2 = tpu.matmul %0, %1, %cst {dimension_numbers = #tpu.dot_dimension_numbers<[1], [0], [0], [1], [0, 0, 1, 1], [], []>} : vector<8x256xf32>, vector<256x8xf32>, vector<8x8xf32> -> vector<8x8xf32>
    %c0_3 = arith.constant 0 : index
    %c0_4 = arith.constant 0 : index
    %3 = vector.load %arg3[%c0_3, %c0_4] : memref<1x8xf32, #tpu.memory_space<vmem>>, vector<1x8xf32>
    %4 = vector.broadcast %3 : vector<1x8xf32> to vector<8x8xf32>
    %5 = arith.addf %2, %4 : vector<8x8xf32>
    %c0_5 = arith.constant 0 : index
    %c0_6 = arith.constant 0 : index
    %6 = vector.load %arg4[%c0_5, %c0_6] : memref<8x8xf32, #tpu.memory_space<vmem>>, vector<8x8xf32>
    tpu.vector_store %arg4[%c0_5, %c0_6], %5 {strides = array<i32>} : memref<8x8xf32, #tpu.memory_space<vmem>>, vector<8x8xf32>,
    return
  }
  func.func @transform_0(%arg0: i32) -> (i32, i32) {
    %c0_i32 = arith.constant 0 : i32
    %c0_i32_0 = arith.constant 0 : i32
    return %arg0, %c0_i32 : i32, i32
  }
  func.func @transform_1(%arg0: i32) -> (i32, i32) {
    %c0_i32 = arith.constant 0 : i32
    %c0_i32_0 = arith.constant 0 : i32
    %c0_i32_1 = arith.constant 0 : i32
    return %c0_i32, %c0_i32_0 : i32, i32
  }
  func.func @transform_2(%arg0: i32) -> (i32, i32) {
    %c0_i32 = arith.constant 0 : i32
    %c0_i32_0 = arith.constant 0 : i32
    %c0_i32_1 = arith.constant 0 : i32
    return %c0_i32, %c0_i32_0 : i32, i32
  }
  func.func @transform_3(%arg0: i32) -> (i32, i32) {
    %c0_i32 = arith.constant 0 : i32
    %c0_i32_0 = arith.constant 0 : i32
    return %arg0, %c0_i32 : i32, i32
  }
}

</mosaic_0001>

<llo_original>
// kernel: tpu_custom_call.1
$region0: #{tpu_custom_call.1}
  #allocation0 [shape = 'u32[]', space=smem, size = 0x4, offset = 0x4, fixed_abs, tag = 'smem constant byte address 0x4 - core index']
  #allocation1 [shape = 'u32[72,128]{1,0:T(1,128)}', space=vmem, size = 0x9000, scoped, tag = 'internal scratch']
  %s0 = inlined_call_operand.vmem [shape: f32[8,256], index: 0, kind: input, shape index: {}]
  %s1 = inlined_call_operand.vmem [shape: f32[256,8], index: 1, kind: input, shape index: {}]
  %s2 = inlined_call_operand.vmem [shape: f32[1,8], index: 2, kind: input, shape index: {}]
  %s3 = inlined_call_operand.hbm [shape: f32[8,8], index: 3, kind: output, shape index: {}]
  %s4 = sld [smem:[#allocation0]]
  $region22: #{tpu_custom_call.1} parent=0
    _
  %s6 = ssub.s32 1, %s4
  %s7 = scalar_select 0, %s6, %s4
  $region1: #{tpu_custom_call.1} parent=0
    #allocation2 [shape = 'u8[4096]{0}', space=vmem, size = 0x1000, scoped, tag = 'output window, operand 0, single buffered']
    #allocation3 [shape = 's32[1]{0}', space=sflag, size = 0x4, scoped, tag = 'scoped memory for tpu_custom_call.1']
    %8 = vsyncpa [#allocation3], 0
    // Predicated region
    $region2: #{tpu_custom_call.1} parent=1 // pred_check
      _
    $region3: #{tpu_custom_call.1} parent=1 // pred_check_branch
      %10 = sbr.rel (0) target = $region5
    $region4: #{tpu_custom_call.1} parent=1 // pred_region
      _
    $region5: #{tpu_custom_call.1} parent=1 // pred_fallthru
      _
    // Predicated region
    $region6: #{tpu_custom_call.1} parent=1 // pred_check
      _
    $region7: #{tpu_custom_call.1} parent=1 // pred_check_branch
      %12 = sbr.rel (0) target = $region9
    $region8: #{tpu_custom_call.1} parent=1 // pred_region
      _
    $region9: #{tpu_custom_call.1} parent=1 // pred_fallthru
      _
    // Predicated region
    $region10: #{tpu_custom_call.1} parent=1 // pred_check
      _
    $region11: #{tpu_custom_call.1} parent=1 // pred_check_branch
      %14 = sbr.rel (0) target = $region13
    $region12: #{tpu_custom_call.1} parent=1 // pred_region
      _
    $region13: #{tpu_custom_call.1} parent=1 // pred_fallthru
      _
    %v15 = vld [vmem:[%s0] sm:$0xff]
    %v16 = vld [vmem:[%s0 + $0x8] sm:$0xff]
    %v17 = vld [vmem:[%s1] sm:$0xff]
    %v18 = vld [vmem:[%s1 + $0x8] sm:$0xff]
    %v19 = vld [vmem:[%s1 + $0x10] sm:$0xff]
    %v20 = vld [vmem:[%s1 + $0x18] sm:$0xff]
    %v21 = vld [vmem:[%s1 + $0x20] sm:$0xff]
    %v22 = vld [vmem:[%s1 + $0x28] sm:$0xff]
    %v23 = vld [vmem:[%s1 + $0x30] sm:$0xff]
    %v24 = vld [vmem:[%s1 + $0x38] sm:$0xff]
    %v25 = vld [vmem:[%s1 + $0x40] sm:$0xff]
    %v26 = vld [vmem:[%s1 + $0x48] sm:$0xff]
    %v27 = vld [vmem:[%s1 + $0x50] sm:$0xff]
    %v28 = vld [vmem:[%s1 + $0x58] sm:$0xff]
    %v29 = vld [vmem:[%s1 + $0x60] sm:$0xff]
    %v30 = vld [vmem:[%s1 + $0x68] sm:$0xff]
    %v31 = vld [vmem:[%s1 + $0x70] sm:$0xff]
    %v32 = vld [vmem:[%s1 + $0x78] sm:$0xff]
    %v33 = vld [vmem:[%s1 + $0x80] sm:$0xff]
    %v34 = vld [vmem:[%s1 + $0x88] sm:$0xff]
    %v35 = vld [vmem:[%s1 + $0x90] sm:$0xff]
    %v36 = vld [vmem:[%s1 + $0x98] sm:$0xff]
    %v37 = vld [vmem:[%s1 + $0xa0] sm:$0xff]
    %v38 = vld [vmem:[%s1 + $0xa8] sm:$0xff]
    %v39 = vld [vmem:[%s1 + $0xb0] sm:$0xff]
    %v40 = vld [vmem:[%s1 + $0xb8] sm:$0xff]
    %v41 = vld [vmem:[%s1 + $0xc0] sm:$0xff]
    %v42 = vld [vmem:[%s1 + $0xc8] sm:$0xff]
    %v43 = vld [vmem:[%s1 + $0xd0] sm:$0xff]
    %v44 = vld [vmem:[%s1 + $0xd8] sm:$0xff]
    %v45 = vld [vmem:[%s1 + $0xe0] sm:$0xff]
    %v46 = vld [vmem:[%s1 + $0xe8] sm:$0xff]
    %v47 = vld [vmem:[%s1 + $0xf0] sm:$0xff]
    %v48 = vld [vmem:[%s1 + $0xf8] sm:$0xff]
    %v49 = vld [vmem:[%s2] sm:$0x1]
    %v51 = vperm.slane %v49, 0
    %53 = vmatpush.msra.mxu0 %v32
    %54 = vmatpush.msra.mxu0 %v31
    %55 = vmatpush.msra.mxu0 %v30
    %56 = vmatpush.msra.mxu0 %v29
    %57 = vmatpush.msra.mxu0 %v28
    %58 = vmatpush.msra.mxu0 %v27
    %59 = vmatpush.msra.mxu0 %v26
    %60 = vmatpush.msra.mxu0 %v25
    %61 = vmatpush.msra.mxu0 %v24
    %62 = vmatpush.msra.mxu0 %v23
    %63 = vmatpush.msra.mxu0 %v22
    %64 = vmatpush.msra.mxu0 %v21
    %65 = vmatpush.msra.mxu0 %v20
    %66 = vmatpush.msra.mxu0 %v19
    %67 = vmatpush.msra.mxu0 %v18
    %68 = vmatpush.msra.mxu0 %v17
    %69 = vmatmul.f32.gmra.mxu0 %v15
    %v70 = vpop.f32.mrf.mxu0
    %v71 = vadd.f32 %v51, %v70
    %72 = vdwg.mxu0
    %73 = vmatpush.msra.mxu0 %v48
    %74 = vmatpush.msra.mxu0 %v47
    %75 = vmatpush.msra.mxu0 %v46
    %76 = vmatpush.msra.mxu0 %v45
    %77 = vmatpush.msra.mxu0 %v44
    %78 = vmatpush.msra.mxu0 %v43
    %79 = vmatpush.msra.mxu0 %v42
    %80 = vmatpush.msra.mxu0 %v41
    %81 = vmatpush.msra.mxu0 %v40
    %82 = vmatpush.msra.mxu0 %v39
    %83 = vmatpush.msra.mxu0 %v38
    %84 = vmatpush.msra.mxu0 %v37
    %85 = vmatpush.msra.mxu0 %v36
    %86 = vmatpush.msra.mxu0 %v35
    %87 = vmatpush.msra.mxu0 %v34
    %88 = vmatpush.msra.mxu0 %v33
    %89 = vmatmul.f32.gmra.mxu0 %v16
    %v90 = vpop.f32.mrf.mxu0
    %v91 = vadd.f32 %v71, %v90
    %92 = vdwg.mxu0
    %vm93 = vcmask 64512
    %94 = vst.msk [vmem:[#allocation2] sm:$0xff] %vm93, %v91
    // Predicated region
    $region14: #{tpu_custom_call.1} parent=1 // pred_check
      _
    $region15: #{tpu_custom_call.1} parent=1 // pred_check_branch
      %96 = sbr.rel (0) target = $region17
    $region16: #{tpu_custom_call.1} parent=1 // pred_region
      %98 = vsyncadd [#allocation3], 0
      %s100 = sshll.u32 [#allocation2], 4
      %s101 = int_to_ptr.vmem [resolvable:$true] %s100
      %s102 = sshll.u32 %s3, 4
      %s103 = int_to_ptr.hbm [resolvable:$true] %s102
      %105 = dma.vmem_to_hbm [thread:$0]  %s101, 128, %s103, [#allocation3]
    $region17: #{tpu_custom_call.1} parent=1 // pred_fallthru
      _
    // Predicated region
    $region18: #{tpu_custom_call.1} parent=1 // pred_check
      _
    $region19: #{tpu_custom_call.1} parent=1 // pred_check_branch
      %107 = sbr.rel (0) target = $region21
    $region20: #{tpu_custom_call.1} parent=1 // pred_region
      %109 = dma.done [#allocation3], 128
    $region21: #{tpu_custom_call.1} parent=1 // pred_fallthru
      _
    %110 = vsyncpa [#allocation3], 1

</llo_original>
